<compile_context>
chip_gen: v7x
topology: tpu7x:2x2x1
jax: 0.10.0
libtpu: 0.0.40
codegen_flags: <defaults>
</compile_context>

<pallas_src>
import functools
import math

import jax
import jax.numpy as jnp
from jax.experimental import pallas as pl
from jax.experimental.pallas import tpu as pltpu


def _lstm_cellb_kernel(x_ref, hx_ref, cx_ref, wx_ref, wh_ref, b_ref,
                       ct_ref, ht_ref, *, hidden_size):
    """One batch-tile of the LSTMCellb forward.

    x_ref  : [TB, I]      input activations
    hx_ref : [TB, H]      previous hidden state
    cx_ref : [TB, H]      previous cell state
    wx_ref : [I, 4H]      W_ih^T   (VMEM-resident, constant block index)
    wh_ref : [H, 4H]      W_hh^T   (VMEM-resident, constant block index)
    b_ref  : [TB, 4H]     effective bias (forget slot already = 1)
    ct_ref : [TB, H]
    ht_ref : [TB, H]
    """
    H = hidden_size

    wx = wx_ref[...]
    wh = wh_ref[...]
    x = x_ref[...]
    hx = hx_ref[...]
    if wx.dtype != x.dtype:
        # Weights were pre-cast (e.g. bf16) once at prep time; only the small
        # per-tile activations need a cast here.  Accumulation stays f32.
        x = x.astype(wx.dtype)
        hx = hx.astype(wh.dtype)

    # Two accumulating MXU matmuls into one f32 gate buffer: [TB, 4H].
    gates = jnp.dot(x, wx, preferred_element_type=jnp.float32)
    gates = gates + jnp.dot(hx, wh, preferred_element_type=jnp.float32)
    gates = gates + b_ref[...].astype(jnp.float32)

    # Gate nonlinearities / cell update in f32 on VPU+EUP.
    # H is a multiple of 128 so every slice below is lane-aligned.
    it = jnp.tanh(gates[:, 0:H])
    jt = jax.nn.sigmoid(gates[:, H:2 * H])
    ft = jax.nn.sigmoid(gates[:, 2 * H:3 * H])   # +1 bias folded into b_ref
    ot = jnp.tanh(gates[:, 3 * H:4 * H])

    ct = cx_ref[...].astype(jnp.float32) * ft + it * jt
    ht = jnp.tanh(ct) * ot

    ct_ref[...] = ct.astype(ct_ref.dtype)
    ht_ref[...] = ht.astype(ht_ref.dtype)


def prepare_params(weight_ih, weight_hh, bias, *, weights_dtype=None):
    """One-time parameter prep (hoisted out of the per-call path).

    weight_ih: [4H, I], weight_hh: [4H, H], bias: [B, 4H]
    Returns:
      w_x      : [I, 4H]  = W_ih^T   (optionally pre-cast to weights_dtype)
      w_h      : [H, 4H]  = W_hh^T   (optionally pre-cast to weights_dtype)
      bias_eff : [B, 4H]  with the forget-gate slot REPLACED by 1.0
                 (matches the module: bias[:, 2H:3H] is discarded, bf = ones)
    """
    H = weight_hh.shape[1]
    w_x = weight_ih.T
    w_h = weight_hh.T
    if weights_dtype is not None:
        w_x = w_x.astype(weights_dtype)
        w_h = w_h.astype(weights_dtype)
    ones = jnp.ones_like(bias[:, 2 * H:3 * H])
    bias_eff = jnp.concatenate([bias[:, :2 * H], ones, bias[:, 3 * H:]], axis=1)
    return w_x, w_h, bias_eff


def _choose_batch_tile(B, batch_tile):
    """Pick a batch tile that avoids padding when possible.

    Returns (tb, Bp) where Bp is the (possibly padded) batch extent.
    """
    if B <= batch_tile:
        return B, B                       # single tile, no padding
    # Prefer a tile that divides B and is a multiple of 8 (sublane aligned).
    tb = (batch_tile // 8) * 8
    while tb >= 8:
        if B % tb == 0:
            return tb, B
        tb -= 8
    # Fall back to padding (only for pathological B).
    tb = batch_tile
    Bp = -(-B // tb) * tb
    return tb, Bp


def lstm_cellb_forward(x, hidden, w_x, w_h, bias_eff, *, batch_tile=256):
    """Pallas forward for LSTMCellb.

    Args:
      x:        [B, I]
      hidden:   (hx, cx), each [B, H]
      w_x:      [I, 4H]   from prepare_params
      w_h:      [H, 4H]   from prepare_params
      bias_eff: [B, 4H]   from prepare_params
    Returns:
      (ct, ht), each [B, H]
    """
    hx, cx = hidden
    B, I = x.shape
    H = hx.shape[1]
    dtype = x.dtype

    tb, Bp = _choose_batch_tile(B, batch_tile)
    if Bp != B:
        # Rare fallback path; padded rows are sliced off and never consumed.
        pad = Bp - B
        x = jnp.pad(x, ((0, pad), (0, 0)))
        hx = jnp.pad(hx, ((0, pad), (0, 0)))
        cx = jnp.pad(cx, ((0, pad), (0, 0)))
        bias_eff = jnp.pad(bias_eff, ((0, pad), (0, 0)))
    n_b = Bp // tb

    kernel = functools.partial(_lstm_cellb_kernel, hidden_size=H)

    ct, ht = pl.pallas_call(
        kernel,
        out_shape=(
            jax.ShapeDtypeStruct((Bp, H), dtype),
            jax.ShapeDtypeStruct((Bp, H), dtype),
        ),
        grid_spec=pltpu.PrefetchScalarGridSpec(
            num_scalar_prefetch=0,
            grid=(n_b,),
            in_specs=[
                pl.BlockSpec((tb, I), lambda i: (i, 0)),          # x
                pl.BlockSpec((tb, H), lambda i: (i, 0)),          # hx
                pl.BlockSpec((tb, H), lambda i: (i, 0)),          # cx
                pl.BlockSpec((I, 4 * H), lambda i: (0, 0)),       # W_ih^T (resident)
                pl.BlockSpec((H, 4 * H), lambda i: (0, 0)),       # W_hh^T (resident)
                pl.BlockSpec((tb, 4 * H), lambda i: (i, 0)),      # bias (per-row, per module)
            ],
            out_specs=(
                pl.BlockSpec((tb, H), lambda i: (i, 0)),          # ct
                pl.BlockSpec((tb, H), lambda i: (i, 0)),          # ht
            ),
        ),
        compiler_params=pltpu.CompilerParams(
            dimension_semantics=("parallel",),
        ),
    )(x, hx, cx, w_x, w_h, bias_eff)

    if Bp != B:
        ct, ht = ct[:B], ht[:B]
    return ct, ht


def _init_params(key, input_size, hidden_size, batch_size, dtype=jnp.float32):
    """Matches reset_parameters(): uniform(-std, std), std = 1/sqrt(H)."""
    std = 1.0 / math.sqrt(hidden_size)
    k1, k2, k3 = jax.random.split(key, 3)
    weight_ih = jax.random.uniform(k1, (4 * hidden_size, input_size),
                                   minval=-std, maxval=std, dtype=dtype)
    weight_hh = jax.random.uniform(k2, (4 * hidden_size, hidden_size),
                                   minval=-std, maxval=std, dtype=dtype)
    bias = jax.random.uniform(k3, (batch_size, 4 * hidden_size),
                              minval=-std, maxval=std, dtype=dtype)
    return weight_ih, weight_hh, bias


def _reference_forward(x, hidden, weight_ih, weight_hh, bias):
    """Pure-JAX reference mirroring the PyTorch LSTMCellb.forward exactly."""
    hx, cx = hidden
    B = x.shape[0]
    H = hx.shape[1]
    wxi, wxj = weight_ih[:H], weight_ih[H:2 * H]
    wxf, wxo = weight_ih[2 * H:3 * H], weight_ih[3 * H:]
    whi, whj = weight_hh[:H], weight_hh[H:2 * H]
    whf, who = weight_hh[2 * H:3 * H], weight_hh[3 * H:]
    bi = bias[:, :H]
    bj = bias[:, H:2 * H]
    bf = jnp.ones((B, H), dtype=x.dtype)    # forget bias is hard-coded ones
    bo = bias[:, 3 * H:]
    it = jnp.tanh(x @ wxi.T + hx @ whi.T + bi)
    jt = jax.nn.sigmoid(x @ wxj.T + hx @ whj.T + bj)
    ft = jax.nn.sigmoid(x @ wxf.T + hx @ whf.T + bf)
    ot = jnp.tanh(x @ wxo.T + hx @ who.T + bo)
    ct = cx * ft + it * jt
    ht = jnp.tanh(ct) * ot
    return ct, ht


if __name__ == "__main__":
    batch_size = 8
    input_size = 32
    hidden_size = 128   # lane-aligned: gate slices and output stores are unmasked
    dtype = jnp.float32

    key = jax.random.PRNGKey(0)
    kp, kx, kh, kc = jax.random.split(key, 4)

    weight_ih, weight_hh, bias = _init_params(
        kp, input_size, hidden_size, batch_size, dtype)

    x = jax.random.normal(kx, (batch_size, input_size), dtype=dtype)
    hx = jax.random.normal(kh, (batch_size, hidden_size), dtype=dtype)
    cx = jax.random.normal(kc, (batch_size, hidden_size), dtype=dtype)

    # One-time param prep (would live at module init in a real pipeline).
    # For v6e/v7x deployments pass weights_dtype=jnp.bfloat16 here (and loosen
    # the tolerance below); default f32 keeps the correctness check tight.
    w_x, w_h, bias_eff = prepare_params(weight_ih, weight_hh, bias)

    ct, ht = lstm_cellb_forward(x, (hx, cx), w_x, w_h, bias_eff)
    ct = jax.block_until_ready(ct)
    ht = jax.block_until_ready(ht)

    ct_ref, ht_ref = _reference_forward(x, (hx, cx), weight_ih, weight_hh, bias)

    assert jnp.allclose(ct, ct_ref, atol=1e-4, rtol=1e-4), "ct mismatch"
    assert jnp.allclose(ht, ht_ref, atol=1e-4, rtol=1e-4), "ht mismatch"

    print("KERNEL_OK")
</pallas_src>

<mosaic_0001>
module attributes {stable_mosaic.version = 11 : i64} {
  func.func @_lstm_cellb_kernel(%arg0: i32, %arg1: memref<8x32xf32, #tpu.memory_space<vmem>>, %arg2: memref<8x128xf32, #tpu.memory_space<vmem>>, %arg3: memref<8x128xf32, #tpu.memory_space<vmem>>, %arg4: memref<32x512xf32, #tpu.memory_space<vmem>>, %arg5: memref<128x512xf32, #tpu.memory_space<vmem>>, %arg6: memref<8x512xf32, #tpu.memory_space<vmem>>, %arg7: memref<8x128xf32, #tpu.memory_space<vmem>>, %arg8: memref<8x128xf32, #tpu.memory_space<vmem>>) attributes {dimension_semantics = [#tpu.dimension_semantics<parallel>], iteration_bounds = array<i64: 1>, scalar_prefetch = 0 : i64, scratch_operands = 0 : i64, tpu.core_type = #tpu.core_type<tc>, window_params = [{transform_indices = @transform_0, window_bounds = array<i64: 8, 32>}, {transform_indices = @transform_1, window_bounds = array<i64: 8, 128>}, {transform_indices = @transform_2, window_bounds = array<i64: 8, 128>}, {pipeline_mode = #tpu.pipeline_mode<synchronous>, transform_indices = @transform_3, window_bounds = array<i64: 32, 512>}, {pipeline_mode = #tpu.pipeline_mode<synchronous>, transform_indices = @transform_4, window_bounds = array<i64: 128, 512>}, {transform_indices = @transform_5, window_bounds = array<i64: 8, 512>}, {transform_indices = @transform_6, window_bounds = array<i64: 8, 128>}, {transform_indices = @transform_7, window_bounds = array<i64: 8, 128>}]} {
    %c0 = arith.constant 0 : index
    %c0_0 = arith.constant 0 : index
    %0 = vector.load %arg4[%c0, %c0_0] : memref<32x512xf32, #tpu.memory_space<vmem>>, vector<32x512xf32>
    %c0_1 = arith.constant 0 : index
    %c0_2 = arith.constant 0 : index
    %1 = vector.load %arg5[%c0_1, %c0_2] : memref<128x512xf32, #tpu.memory_space<vmem>>, vector<128x512xf32>
    %c0_3 = arith.constant 0 : index
    %c0_4 = arith.constant 0 : index
    %2 = vector.load %arg1[%c0_3, %c0_4] : memref<8x32xf32, #tpu.memory_space<vmem>>, vector<8x32xf32>
    %c0_5 = arith.constant 0 : index
    %c0_6 = arith.constant 0 : index
    %3 = vector.load %arg2[%c0_5, %c0_6] : memref<8x128xf32, #tpu.memory_space<vmem>>, vector<8x128xf32>
    %cst = arith.constant dense<0.000000e+00> : vector<8x512xf32>
    %4 = tpu.matmul %2, %0, %cst {dimension_numbers = #tpu.dot_dimension_numbers<[1], [0], [0], [1], [0, 0, 1, 1], [], []>} : vector<8x32xf32>, vector<32x512xf32>, vector<8x512xf32> -> vector<8x512xf32>
    %cst_7 = arith.constant dense<0.000000e+00> : vector<8x512xf32>
    %5 = tpu.matmul %3, %1, %cst_7 {dimension_numbers = #tpu.dot_dimension_numbers<[1], [0], [0], [1], [0, 0, 1, 1], [], []>} : vector<8x128xf32>, vector<128x512xf32>, vector<8x512xf32> -> vector<8x512xf32>
    %6 = arith.addf %4, %5 : vector<8x512xf32>
    %c0_8 = arith.constant 0 : index
    %c0_9 = arith.constant 0 : index
    %7 = vector.load %arg6[%c0_8, %c0_9] : memref<8x512xf32, #tpu.memory_space<vmem>>, vector<8x512xf32>
    %8 = arith.addf %6, %7 : vector<8x512xf32>
    %9 = vector.extract_strided_slice %8 {offsets = [0, 0], sizes = [8, 128], strides = [1, 1]} : vector<8x512xf32> to vector<8x128xf32>
    %10 = math.tanh %9 : vector<8x128xf32>
    %11 = vector.extract_strided_slice %8 {offsets = [0, 128], sizes = [8, 128], strides = [1, 1]} : vector<8x512xf32> to vector<8x128xf32>
    %12 = arith.negf %11 : vector<8x128xf32>
    %13 = math.exp %12 : vector<8x128xf32>
    %cst_10 = arith.constant 1.000000e+00 : f32
    %14 = vector.broadcast %cst_10 : f32 to vector<8x128xf32>
    %15 = arith.addf %14, %13 : vector<8x128xf32>
    %16 = arith.divf %14, %15 : vector<8x128xf32>
    %17 = vector.extract_strided_slice %8 {offsets = [0, 256], sizes = [8, 128], strides = [1, 1]} : vector<8x512xf32> to vector<8x128xf32>
    %18 = arith.negf %17 : vector<8x128xf32>
    %19 = math.exp %18 : vector<8x128xf32>
    %cst_11 = arith.constant 1.000000e+00 : f32
    %20 = vector.broadcast %cst_11 : f32 to vector<8x128xf32>
    %21 = arith.addf %20, %19 : vector<8x128xf32>
    %22 = arith.divf %20, %21 : vector<8x128xf32>
    %23 = vector.extract_strided_slice %8 {offsets = [0, 384], sizes = [8, 128], strides = [1, 1]} : vector<8x512xf32> to vector<8x128xf32>
    %24 = math.tanh %23 : vector<8x128xf32>
    %c0_12 = arith.constant 0 : index
    %c0_13 = arith.constant 0 : index
    %25 = vector.load %arg3[%c0_12, %c0_13] : memref<8x128xf32, #tpu.memory_space<vmem>>, vector<8x128xf32>
    %26 = arith.mulf %25, %22 : vector<8x128xf32>
    %27 = arith.mulf %10, %16 : vector<8x128xf32>
    %28 = arith.addf %26, %27 : vector<8x128xf32>
    %29 = math.tanh %28 : vector<8x128xf32>
    %30 = arith.mulf %29, %24 : vector<8x128xf32>
    %c0_14 = arith.constant 0 : index
    %c0_15 = arith.constant 0 : index
    %31 = vector.load %arg7[%c0_14, %c0_15] : memref<8x128xf32, #tpu.memory_space<vmem>>, vector<8x128xf32>
    tpu.vector_store %arg7[%c0_14, %c0_15], %28 {strides = array<i32>} : memref<8x128xf32, #tpu.memory_space<vmem>>, vector<8x128xf32>,
    %c0_16 = arith.constant 0 : index
    %c0_17 = arith.constant 0 : index
    %32 = vector.load %arg8[%c0_16, %c0_17] : memref<8x128xf32, #tpu.memory_space<vmem>>, vector<8x128xf32>
    tpu.vector_store %arg8[%c0_16, %c0_17], %30 {strides = array<i32>} : memref<8x128xf32, #tpu.memory_space<vmem>>, vector<8x128xf32>,
    return
  }
  func.func @transform_0(%arg0: i32) -> (i32, i32) {
    %c0_i32 = arith.constant 0 : i32
    %c0_i32_0 = arith.constant 0 : i32
    return %arg0, %c0_i32 : i32, i32
  }
  func.func @transform_1(%arg0: i32) -> (i32, i32) {
    %c0_i32 = arith.constant 0 : i32
    %c0_i32_0 = arith.constant 0 : i32
    return %arg0, %c0_i32 : i32, i32
  }
  func.func @transform_2(%arg0: i32) -> (i32, i32) {
    %c0_i32 = arith.constant 0 : i32
    %c0_i32_0 = arith.constant 0 : i32
    return %arg0, %c0_i32 : i32, i32
  }
  func.func @transform_3(%arg0: i32) -> (i32, i32) {
    %c0_i32 = arith.constant 0 : i32
    %c0_i32_0 = arith.constant 0 : i32
    %c0_i32_1 = arith.constant 0 : i32
    return %c0_i32, %c0_i32_0 : i32, i32
  }
  func.func @transform_4(%arg0: i32) -> (i32, i32) {
    %c0_i32 = arith.constant 0 : i32
    %c0_i32_0 = arith.constant 0 : i32
    %c0_i32_1 = arith.constant 0 : i32
    return %c0_i32, %c0_i32_0 : i32, i32
  }
  func.func @transform_5(%arg0: i32) -> (i32, i32) {
    %c0_i32 = arith.constant 0 : i32
    %c0_i32_0 = arith.constant 0 : i32
    return %arg0, %c0_i32 : i32, i32
  }
  func.func @transform_6(%arg0: i32) -> (i32, i32) {
    %c0_i32 = arith.constant 0 : i32
    %c0_i32_0 = arith.constant 0 : i32
    return %arg0, %c0_i32 : i32, i32
  }
  func.func @transform_7(%arg0: i32) -> (i32, i32) {
    %c0_i32 = arith.constant 0 : i32
    %c0_i32_0 = arith.constant 0 : i32
    return %arg0, %c0_i32 : i32, i32
  }
}

</mosaic_0001>

<llo_original>
// kernel: tpu_custom_call.1
$region0: #{tpu_custom_call.1}
  #allocation0 [shape = 'u32[]', space=smem, size = 0x4, offset = 0x4, fixed_abs, tag = 'smem constant byte address 0x4 - core index']
  #allocation1 [shape = 'u32[144,128]{1,0:T(1,128)}', space=vmem, size = 0x12000, scoped, tag = 'internal scratch']
  %s0 = inlined_call_operand.hbm [shape: f32[8,32], index: 0, kind: input, shape index: {}]
  %s1 = inlined_call_operand.hbm [shape: f32[8,128], index: 1, kind: input, shape index: {}]
  %s2 = inlined_call_operand.hbm [shape: f32[8,128], index: 2, kind: input, shape index: {}]
  %s3 = inlined_call_operand.hbm [shape: f32[32,512], index: 3, kind: input, shape index: {}]
  %s4 = inlined_call_operand.hbm [shape: f32[128,512], index: 4, kind: input, shape index: {}]
  %s5 = inlined_call_operand.hbm [shape: f32[8,512], index: 5, kind: input, shape index: {}]
  %s6 = inlined_call_operand.hbm [shape: f32[8,128], index: 6, kind: output, shape index: {0}]
  %s7 = inlined_call_operand.hbm [shape: f32[8,128], index: 7, kind: output, shape index: {1}]
  %8 = xla_tuple %s6, %s7
  %s9 = sld [smem:[#allocation0]]
  $region66: #{tpu_custom_call.1} parent=0
    _
  %s11 = ssub.s32 1, %s9
  %s12 = scalar_select 0, %s11, %s9
  $region1: #{tpu_custom_call.1} parent=0
    #allocation2 [shape = 'u8[4096]{0}', space=vmem, size = 0x1000, scoped, tag = 'input window, operand 0, single buffered']
    #allocation3 [shape = 's32[1]{0}', space=sflag, size = 0x4, scoped, tag = 'scoped memory for tpu_custom_call.1']
    #allocation4 [shape = 's32[1]{0}', space=sflag, size = 0x4, scoped, tag = 'scoped memory for tpu_custom_call.1']
    #allocation5 [shape = 'u8[4096]{0}', space=vmem, size = 0x1000, scoped, tag = 'input window, operand 1, single buffered']
    #allocation6 [shape = 's32[1]{0}', space=sflag, size = 0x4, scoped, tag = 'scoped memory for tpu_custom_call.1']
    #allocation7 [shape = 'u8[4096]{0}', space=vmem, size = 0x1000, scoped, tag = 'input window, operand 2, single buffered']
    #allocation8 [shape = 'u8[65536]{0}', space=vmem, size = 0x10000, scoped, tag = 'input window, operand 3, single buffered']
    #allocation9 [shape = 's32[1]{0}', space=sflag, size = 0x4, scoped, tag = 'scoped memory for tpu_custom_call.1']
    #allocation10 [shape = 'u8[262144]{0}', space=vmem, size = 0x40000, scoped, tag = 'input window, operand 4, single buffered']
    #allocation11 [shape = 'u8[16384]{0}', space=vmem, size = 0x4000, scoped, tag = 'input window, operand 5, single buffered']
    #allocation12 [shape = 's32[1]{0}', space=sflag, size = 0x4, scoped, tag = 'scoped memory for tpu_custom_call.1']
    #allocation13 [shape = 'u8[4096]{0}', space=vmem, size = 0x1000, scoped, tag = 'output window, operand 0, single buffered']
    #allocation14 [shape = 'u8[4096]{0}', space=vmem, size = 0x1000, scoped, tag = 'output window, operand 1, single buffered']
    #allocation15 [shape = 's32[1]{0}', space=sflag, size = 0x4, scoped, tag = 'scoped memory for tpu_custom_call.1']
    %13 = vsyncpa [#allocation3], 0
    %14 = vsyncpa [#allocation6], 0
    %15 = vsyncpa [#allocation9], 0
    %16 = vsyncpa [#allocation12], 0
    %17 = vsyncpa [#allocation4], 0
    %18 = vsyncpa [#allocation15], 0
    // Predicated region
    $region2: #{tpu_custom_call.1} parent=1 // pred_check
      _
    $region3: #{tpu_custom_call.1} parent=1 // pred_check_branch
      %20 = sbr.rel (0) target = $region5
    $region4: #{tpu_custom_call.1} parent=1 // pred_region
      %s22 = ssub.s32 128, 128
      %23 = vsyncadd [#allocation3], %s22
      %s25 = sshll.u32 [#allocation2], 4
      %s26 = int_to_ptr.vmem [resolvable:$true] %s25
      %28 = dma.hbm_to_vmem [thread:$0]  %s0, 128, %s26, [#allocation3]
    $region5: #{tpu_custom_call.1} parent=1 // pred_fallthru
      _
    // Predicated region
    $region6: #{tpu_custom_call.1} parent=1 // pred_check
      _
    $region7: #{tpu_custom_call.1} parent=1 // pred_check_branch
      %30 = sbr.rel (0) target = $region9
    $region8: #{tpu_custom_call.1} parent=1 // pred_region
      %s32 = ssub.s32 128, 128
      %33 = vsyncadd [#allocation6], %s32
      %s35 = sshll.u32 [#allocation5], 4
      %s36 = int_to_ptr.vmem [resolvable:$true] %s35
      %38 = dma.hbm_to_vmem [thread:$0]  %s1, 128, %s36, [#allocation6]
    $region9: #{tpu_custom_call.1} parent=1 // pred_fallthru
      _
    // Predicated region
    $region10: #{tpu_custom_call.1} parent=1 // pred_check
      _
    $region11: #{tpu_custom_call.1} parent=1 // pred_check_branch
      %40 = sbr.rel (0) target = $region13
    $region12: #{tpu_custom_call.1} parent=1 // pred_region
      %s42 = ssub.s32 128, 128
      %43 = vsyncadd [#allocation6], %s42
      %s45 = sshll.u32 [#allocation7], 4
      %s46 = int_to_ptr.vmem [resolvable:$true] %s45
      %48 = dma.hbm_to_vmem [thread:$0]  %s2, 128, %s46, [#allocation6]
    $region13: #{tpu_custom_call.1} parent=1 // pred_fallthru
      _
    // Predicated region
    $region14: #{tpu_custom_call.1} parent=1 // pred_check
      _
    $region15: #{tpu_custom_call.1} parent=1 // pred_check_branch
      %50 = sbr.rel (0) target = $region17
    $region16: #{tpu_custom_call.1} parent=1 // pred_region
      %s52 = ssub.s32 2048, 2048
      %53 = vsyncadd [#allocation9], %s52
      %s54 = sshll.u32 [#allocation8], 4
      %s55 = int_to_ptr.vmem [resolvable:$true] %s54
      %60 = dma.hbm_to_vmem [thread:$0]  %s3, 2048, %s55, [#allocation9], 512, 512, 32
    $region17: #{tpu_custom_call.1} parent=1 // pred_fallthru
      _
    // Predicated region
    $region18: #{tpu_custom_call.1} parent=1 // pred_check
      _
    $region19: #{tpu_custom_call.1} parent=1 // pred_check_branch
      %62 = sbr.rel (0) target = $region21
    $region20: #{tpu_custom_call.1} parent=1 // pred_region
      %s64 = ssub.s32 8192, 8192
      %65 = vsyncadd [#allocation9], %s64
      %s66 = sshll.u32 [#allocation10], 4
      %s67 = int_to_ptr.vmem [resolvable:$true] %s66
      %72 = dma.hbm_to_vmem [thread:$0]  %s4, 8192, %s67, [#allocation9], 512, 512, 32
    $region21: #{tpu_custom_call.1} parent=1 // pred_fallthru
      _
    // Predicated region
    $region22: #{tpu_custom_call.1} parent=1 // pred_check
      _
    $region23: #{tpu_custom_call.1} parent=1 // pred_check_branch
      %74 = sbr.rel (0) target = $region25
    $region24: #{tpu_custom_call.1} parent=1 // pred_region
      %s76 = ssub.s32 512, 512
      %77 = vsyncadd [#allocation12], %s76
      %s79 = sshll.u32 [#allocation11], 4
      %s80 = int_to_ptr.vmem [resolvable:$true] %s79
      %82 = dma.hbm_to_vmem [thread:$0]  %s5, 512, %s80, [#allocation12]
    $region25: #{tpu_custom_call.1} parent=1 // pred_fallthru
      _
    // Predicated region
    $region26: #{tpu_custom_call.1} parent=1 // pred_check
      _
    $region27: #{tpu_custom_call.1} parent=1 // pred_check_branch
      %84 = sbr.rel (0) target = $region29
    $region28: #{tpu_custom_call.1} parent=1 // pred_region
      %85 = dma.done [#allocation3], 128
    $region29: #{tpu_custom_call.1} parent=1 // pred_fallthru
      _
    // Predicated region
    $region30: #{tpu_custom_call.1} parent=1 // pred_check
      _
    $region31: #{tpu_custom_call.1} parent=1 // pred_check_branch
      %87 = sbr.rel (0) target = $region33
    $region32: #{tpu_custom_call.1} parent=1 // pred_region
      %88 = dma.done [#allocation6], 128
    $region33: #{tpu_custom_call.1} parent=1 // pred_fallthru
      _
    // Predicated region
    $region34: #{tpu_custom_call.1} parent=1 // pred_check
      _
    $region35: #{tpu_custom_call.1} parent=1 // pred_check_branch
      %90 = sbr.rel (0) target = $region37
    $region36: #{tpu_custom_call.1} parent=1 // pred_region
      %91 = dma.done [#allocation6], 128
    $region37: #{tpu_custom_call.1} parent=1 // pred_fallthru
      _
    // Predicated region
    $region38: #{tpu_custom_call.1} parent=1 // pred_check
      _
    $region39: #{tpu_custom_call.1} parent=1 // pred_check_branch
      %93 = sbr.rel (0) target = $region41
    $region40: #{tpu_custom_call.1} parent=1 // pred_region
      %94 = dma.done [#allocation9], 2048
    $region41: #{tpu_custom_call.1} parent=1 // pred_fallthru
      _
    // Predicated region
    $region42: #{tpu_custom_call.1} parent=1 // pred_check
      _
    $region43: #{tpu_custom_call.1} parent=1 // pred_check_branch
      %96 = sbr.rel (0) target = $region45
    $region44: #{tpu_custom_call.1} parent=1 // pred_region
      %97 = dma.done [#allocation9], 8192
    $region45: #{tpu_custom_call.1} parent=1 // pred_fallthru
      _
    // Predicated region
    $region46: #{tpu_custom_call.1} parent=1 // pred_check
      _
    $region47: #{tpu_custom_call.1} parent=1 // pred_check_branch
      %99 = sbr.rel (0) target = $region49
    $region48: #{tpu_custom_call.1} parent=1 // pred_region
      %100 = dma.done [#allocation12], 512
    $region49: #{tpu_custom_call.1} parent=1 // pred_fallthru
      _
    %v101 = vld [vmem:[#allocation8] sm:$0xff]
    %v102 = vld [vmem:[#allocation8 + $0x8] sm:$0xff]
    %v103 = vld [vmem:[#allocation8 + $0x10] sm:$0xff]
    %v104 = vld [vmem:[#allocation8 + $0x18] sm:$0xff]
    %v105 = vld [vmem:[#allocation8 + $0x20] sm:$0xff]
    %v106 = vld [vmem:[#allocation8 + $0x28] sm:$0xff]
    %v107 = vld [vmem:[#allocation8 + $0x30] sm:$0xff]
    %v108 = vld [vmem:[#allocation8 + $0x38] sm:$0xff]
    %v109 = vld [vmem:[#allocation8 + $0x40] sm:$0xff]
    %v110 = vld [vmem:[#allocation8 + $0x48] sm:$0xff]
    %v111 = vld [vmem:[#allocation8 + $0x50] sm:$0xff]
    %v112 = vld [vmem:[#allocation8 + $0x58] sm:$0xff]
    %v113 = vld [vmem:[#allocation8 + $0x60] sm:$0xff]
    %v114 = vld [vmem:[#allocation8 + $0x68] sm:$0xff]
    %v115 = vld [vmem:[#allocation8 + $0x70] sm:$0xff]
    %v116 = vld [vmem:[#allocation8 + $0x78] sm:$0xff]
    %v117 = vld [vmem:[#allocation10] sm:$0xff]
    %v118 = vld [vmem:[#allocation10 + $0x8] sm:$0xff]
    %v119 = vld [vmem:[#allocation10 + $0x10] sm:$0xff]
    %v120 = vld [vmem:[#allocation10 + $0x18] sm:$0xff]
    %v121 = vld [vmem:[#allocation10 + $0x20] sm:$0xff]
    %v122 = vld [vmem:[#allocation10 + $0x28] sm:$0xff]
    %v123 = vld [vmem:[#allocation10 + $0x30] sm:$0xff]
    %v124 = vld [vmem:[#allocation10 + $0x38] sm:$0xff]
    %v125 = vld [vmem:[#allocation10 + $0x40] sm:$0xff]
    %v126 = vld [vmem:[#allocation10 + $0x48] sm:$0xff]
    %v127 = vld [vmem:[#allocation10 + $0x50] sm:$0xff]
    %v128 = vld [vmem:[#allocation10 + $0x58] sm:$0xff]
    %v129 = vld [vmem:[#allocation10 + $0x60] sm:$0xff]
    %v130 = vld [vmem:[#allocation10 + $0x68] sm:$0xff]
    %v131 = vld [vmem:[#allocation10 + $0x70] sm:$0xff]
    %v132 = vld [vmem:[#allocation10 + $0x78] sm:$0xff]
    %v133 = vld [vmem:[#allocation10 + $0x80] sm:$0xff]
    %v134 = vld [vmem:[#allocation10 + $0x88] sm:$0xff]
    %v135 = vld [vmem:[#allocation10 + $0x90] sm:$0xff]
    %v136 = vld [vmem:[#allocation10 + $0x98] sm:$0xff]
    %v137 = vld [vmem:[#allocation10 + $0xa0] sm:$0xff]
    %v138 = vld [vmem:[#allocation10 + $0xa8] sm:$0xff]
    %v139 = vld [vmem:[#allocation10 + $0xb0] sm:$0xff]
    %v140 = vld [vmem:[#allocation10 + $0xb8] sm:$0xff]
    %v141 = vld [vmem:[#allocation10 + $0xc0] sm:$0xff]
    %v142 = vld [vmem:[#allocation10 + $0xc8] sm:$0xff]
    %v143 = vld [vmem:[#allocation10 + $0xd0] sm:$0xff]
    %v144 = vld [vmem:[#allocation10 + $0xd8] sm:$0xff]
    %v145 = vld [vmem:[#allocation10 + $0xe0] sm:$0xff]
    %v146 = vld [vmem:[#allocation10 + $0xe8] sm:$0xff]
    %v147 = vld [vmem:[#allocation10 + $0xf0] sm:$0xff]
    %v148 = vld [vmem:[#allocation10 + $0xf8] sm:$0xff]
    %v149 = vld [vmem:[#allocation10 + $0x100] sm:$0xff]
    %v150 = vld [vmem:[#allocation10 + $0x108] sm:$0xff]
    %v151 = vld [vmem:[#allocation10 + $0x110] sm:$0xff]
    %v152 = vld [vmem:[#allocation10 + $0x118] sm:$0xff]
    %v153 = vld [vmem:[#allocation10 + $0x120] sm:$0xff]
    %v154 = vld [vmem:[#allocation10 + $0x128] sm:$0xff]
    %v155 = vld [vmem:[#allocation10 + $0x130] sm:$0xff]
    %v156 = vld [vmem:[#allocation10 + $0x138] sm:$0xff]
    %v157 = vld [vmem:[#allocation10 + $0x140] sm:$0xff]
    %v158 = vld [vmem:[#allocation10 + $0x148] sm:$0xff]
    %v159 = vld [vmem:[#allocation10 + $0x150] sm:$0xff]
    %v160 = vld [vmem:[#allocation10 + $0x158] sm:$0xff]
    %v161 = vld [vmem:[#allocation10 + $0x160] sm:$0xff]
    %v162 = vld [vmem:[#allocation10 + $0x168] sm:$0xff]
    %v163 = vld [vmem:[#allocation10 + $0x170] sm:$0xff]
    %v164 = vld [vmem:[#allocation10 + $0x178] sm:$0xff]
    %v165 = vld [vmem:[#allocation10 + $0x180] sm:$0xff]
    %v166 = vld [vmem:[#allocation10 + $0x188] sm:$0xff]
    %v167 = vld [vmem:[#allocation10 + $0x190] sm:$0xff]
    %v168 = vld [vmem:[#allocation10 + $0x198] sm:$0xff]
    %v169 = vld [vmem:[#allocation10 + $0x1a0] sm:$0xff]
    %v170 = vld [vmem:[#allocation10 + $0x1a8] sm:$0xff]
    %v171 = vld [vmem:[#allocation10 + $0x1b0] sm:$0xff]
    %v172 = vld [vmem:[#allocation10 + $0x1b8] sm:$0xff]
    %v173 = vld [vmem:[#allocation10 + $0x1c0] sm:$0xff]
    %v174 = vld [vmem:[#allocation10 + $0x1c8] sm:$0xff]
    %v175 = vld [vmem:[#allocation10 + $0x1d0] sm:$0xff]
    %v176 = vld [vmem:[#allocation10 + $0x1d8] sm:$0xff]
    %v177 = vld [vmem:[#allocation10 + $0x1e0] sm:$0xff]
    %v178 = vld [vmem:[#allocation10 + $0x1e8] sm:$0xff]
    %v179 = vld [vmem:[#allocation10 + $0x1f0] sm:$0xff]
    %v180 = vld [vmem:[#allocation10 + $0x1f8] sm:$0xff]
    %v181 = vld [vmem:[#allocation2] sm:$0xff]
    %v182 = vld [vmem:[#allocation5] sm:$0xff]
    %183 = vmatprep.subr.mxu0 %v118
    %184 = vmatpush1.msra.mxu0 %v117
    %185 = vmatprep.subr.mxu0 %v122
    %186 = vmatpush1.msra.mxu0 %v121
    %187 = vmatprep.subr.mxu0 %v126
    %188 = vmatpush1.msra.mxu0 %v125
    %189 = vmatprep.subr.mxu0 %v130
    %190 = vmatpush1.msra.mxu0 %v129
    %191 = vmatprep.subr.mxu0 %v134
    %192 = vmatpush1.msra.mxu0 %v133
    %193 = vmatprep.subr.mxu0 %v138
    %194 = vmatpush1.msra.mxu0 %v137
    %195 = vmatprep.subr.mxu0 %v142
    %196 = vmatpush1.msra.mxu0 %v141
    %197 = vmatprep.subr.mxu0 %v146
    %198 = vmatpush1.msra.mxu0 %v145
    %199 = vmatprep.subr.mxu0 %v150
    %200 = vmatpush1.msra.mxu0 %v149
    %201 = vmatprep.subr.mxu0 %v154
    %202 = vmatpush1.msra.mxu0 %v153
    %203 = vmatprep.subr.mxu0 %v158
    %204 = vmatpush1.msra.mxu0 %v157
    %205 = vmatprep.subr.mxu0 %v162
    %206 = vmatpush1.msra.mxu0 %v161
    %207 = vmatprep.subr.mxu0 %v166
    %208 = vmatpush1.msra.mxu0 %v165
    %209 = vmatprep.subr.mxu0 %v170
    %210 = vmatpush1.msra.mxu0 %v169
    %211 = vmatprep.subr.mxu0 %v174
    %212 = vmatpush1.msra.mxu0 %v173
    %213 = vmatprep.subr.mxu0 %v178
    %214 = vmatpush1.msra.mxu0 %v177
    %215 = vmatprep.subr.mxu0 0.0
    %216 = vmatpush1.msra.mxu0 0.0
    %217 = vmatprep.subr.mxu0 0.0
    %218 = vmatpush1.msra.mxu0 0.0
    %219 = vmatprep.subr.mxu0 0.0
    %220 = vmatpush1.msra.mxu0 0.0
    %221 = vmatprep.subr.mxu0 0.0
    %222 = vmatpush1.msra.mxu0 0.0
    %223 = vmatprep.subr.mxu0 0.0
    %224 = vmatpush1.msra.mxu0 0.0
    %225 = vmatprep.subr.mxu0 0.0
    %226 = vmatpush1.msra.mxu0 0.0
    %227 = vmatprep.subr.mxu0 0.0
    %228 = vmatpush1.msra.mxu0 0.0
    %229 = vmatprep.subr.mxu0 0.0
    %230 = vmatpush1.msra.mxu0 0.0
    %231 = vmatprep.subr.mxu0 0.0
    %232 = vmatpush1.msra.mxu0 0.0
    %233 = vmatprep.subr.mxu0 0.0
    %234 = vmatpush1.msra.mxu0 0.0
    %235 = vmatprep.subr.mxu0 0.0
    %236 = vmatpush1.msra.mxu0 0.0
    %237 = vmatprep.subr.mxu0 0.0
    %238 = vmatpush1.msra.mxu0 0.0
    %239 = vmatprep.subr.mxu0 0.0
    %240 = vmatpush1.msra.mxu0 0.0
    %241 = vmatprep.subr.mxu0 0.0
    %242 = vmatpush1.msra.mxu0 0.0
    %243 = vmatprep.subr.mxu0 0.0
    %244 = vmatpush1.msra.mxu0 0.0
    %245 = vmatprep.subr.mxu0 0.0
    %246 = vmatpush1.msra.mxu0 0.0
    %247 = vmatprep.mubr.f32.mxu0 0.0
    %248 = vmatmul.mubr.f32.gmra.mrb[0].mxu0 %v182
    %v249 = vpop.f32.mrb[0].mxu0
    %v250 = vadd.f32 0.0, %v249
    %v251 = vpop.f32.mrb[0].mxu0
    %v252 = vadd.f32 0.0, %v251
    %253 = vdwg.mxu0
    %254 = vmatprep.subr.mxu0 %v120
    %255 = vmatpush1.msra.mxu0 %v119
    %256 = vmatprep.subr.mxu0 %v124
    %257 = vmatpush1.msra.mxu0 %v123
    %258 = vmatprep.subr.mxu0 %v128
    %259 = vmatpush1.msra.mxu0 %v127
    %260 = vmatprep.subr.mxu0 %v132
    %261 = vmatpush1.msra.mxu0 %v131
    %262 = vmatprep.subr.mxu0 %v136
    %263 = vmatpush1.msra.mxu0 %v135
    %264 = vmatprep.subr.mxu0 %v140
    %265 = vmatpush1.msra.mxu0 %v139
    %266 = vmatprep.subr.mxu0 %v144
    %267 = vmatpush1.msra.mxu0 %v143
    %268 = vmatprep.subr.mxu0 %v148
    %269 = vmatpush1.msra.mxu0 %v147
    %270 = vmatprep.subr.mxu0 %v152
    %271 = vmatpush1.msra.mxu0 %v151
    %272 = vmatprep.subr.mxu0 %v156
    %273 = vmatpush1.msra.mxu0 %v155
    %274 = vmatprep.subr.mxu0 %v160
    %275 = vmatpush1.msra.mxu0 %v159
    %276 = vmatprep.subr.mxu0 %v164
    %277 = vmatpush1.msra.mxu0 %v163
    %278 = vmatprep.subr.mxu0 %v168
    %279 = vmatpush1.msra.mxu0 %v167
    %280 = vmatprep.subr.mxu0 %v172
    %281 = vmatpush1.msra.mxu0 %v171
    %282 = vmatprep.subr.mxu0 %v176
    %283 = vmatpush1.msra.mxu0 %v175
    %284 = vmatprep.subr.mxu0 %v180
    %285 = vmatpush1.msra.mxu0 %v179
    %286 = vmatprep.subr.mxu0 0.0
    %287 = vmatpush1.msra.mxu0 0.0
    %288 = vmatprep.subr.mxu0 0.0
    %289 = vmatpush1.msra.mxu0 0.0
    %290 = vmatprep.subr.mxu0 0.0
    %291 = vmatpush1.msra.mxu0 0.0
    %292 = vmatprep.subr.mxu0 0.0
    %293 = vmatpush1.msra.mxu0 0.0
    %294 = vmatprep.subr.mxu0 0.0
    %295 = vmatpush1.msra.mxu0 0.0
    %296 = vmatprep.subr.mxu0 0.0
    %297 = vmatpush1.msra.mxu0 0.0
    %298 = vmatprep.subr.mxu0 0.0
    %299 = vmatpush1.msra.mxu0 0.0
    %300 = vmatprep.subr.mxu0 0.0
    %301 = vmatpush1.msra.mxu0 0.0
    %302 = vmatprep.subr.mxu0 0.0
    %303 = vmatpush1.msra.mxu0 0.0
    %304 = vmatprep.subr.mxu0 0.0
    %305 = vmatpush1.msra.mxu0 0.0
    %306 = vmatprep.subr.mxu0 0.0
    %307 = vmatpush1.msra.mxu0 0.0
    %308 = vmatprep.subr.mxu0 0.0
    %309 = vmatpush1.msra.mxu0 0.0
    %310 = vmatprep.subr.mxu0 0.0
    %311 = vmatpush1.msra.mxu0 0.0
    %312 = vmatprep.subr.mxu0 0.0
    %313 = vmatpush1.msra.mxu0 0.0
    %314 = vmatprep.subr.mxu0 0.0
    %315 = vmatpush1.msra.mxu0 0.0
    %316 = vmatprep.subr.mxu0 0.0
    %317 = vmatpush1.msra.mxu0 0.0
    %318 = vmatprep.mubr.f32.mxu0 0.0
    %319 = vmatmul.mubr.f32.gmra.mrb[0].mxu0 %v182
    %v320 = vpop.f32.mrb[0].mxu0
    %v321 = vadd.f32 0.0, %v320
    %v322 = vpop.f32.mrb[0].mxu0
    %v323 = vadd.f32 0.0, %v322
    %324 = vdwg.mxu0
    %vm325 = vcmask 261120
    %v327 = vsel %vm325, %v181, 0
    %329 = vmatprep.subr.mxu0 %v102
    %330 = vmatpush1.msra.mxu0 %v101
    %331 = vmatprep.subr.mxu0 %v106
    %332 = vmatpush1.msra.mxu0 %v105
    %333 = vmatprep.subr.mxu0 %v110
    %334 = vmatpush1.msra.mxu0 %v109
    %335 = vmatprep.subr.mxu0 %v114
    %336 = vmatpush1.msra.mxu0 %v113
    %337 = vmatprep.subr.mxu0 0.0
    %338 = vmatpush1.msra.mxu0 0.0
    %339 = vmatprep.subr.mxu0 0.0
    %340 = vmatpush1.msra.mxu0 0.0
    %341 = vmatprep.subr.mxu0 0.0
    %342 = vmatpush1.msra.mxu0 0.0
    %343 = vmatprep.subr.mxu0 0.0
    %344 = vmatpush1.msra.mxu0 0.0
    %345 = vmatprep.subr.mxu0 0.0
    %346 = vmatpush1.msra.mxu0 0.0
    %347 = vmatprep.subr.mxu0 0.0
    %348 = vmatpush1.msra.mxu0 0.0
    %349 = vmatprep.subr.mxu0 0.0
    %350 = vmatpush1.msra.mxu0 0.0
    %351 = vmatprep.subr.mxu0 0.0
    %352 = vmatpush1.msra.mxu0 0.0
    %353 = vmatprep.subr.mxu0 0.0
    %354 = vmatpush1.msra.mxu0 0.0
    %355 = vmatprep.subr.mxu0 0.0
    %356 = vmatpush1.msra.mxu0 0.0
    %357 = vmatprep.subr.mxu0 0.0
    %358 = vmatpush1.msra.mxu0 0.0
    %359 = vmatprep.subr.mxu0 0.0
    %360 = vmatpush1.msra.mxu0 0.0
    %361 = vmatprep.subr.mxu0 0.0
    %362 = vmatpush1.msra.mxu0 0.0
    %363 = vmatprep.subr.mxu0 0.0
    %364 = vmatpush1.msra.mxu0 0.0
    %365 = vmatprep.subr.mxu0 0.0
    %366 = vmatpush1.msra.mxu0 0.0
    %367 = vmatprep.subr.mxu0 0.0
    %368 = vmatpush1.msra.mxu0 0.0
    %369 = vmatprep.subr.mxu0 0.0
    %370 = vmatpush1.msra.mxu0 0.0
    %371 = vmatprep.subr.mxu0 0.0
    %372 = vmatpush1.msra.mxu0 0.0
    %373 = vmatprep.subr.mxu0 0.0
    %374 = vmatpush1.msra.mxu0 0.0
    %375 = vmatprep.subr.mxu0 0.0
    %376 = vmatpush1.msra.mxu0 0.0
    %377 = vmatprep.subr.mxu0 0.0
    %378 = vmatpush1.msra.mxu0 0.0
    %379 = vmatprep.subr.mxu0 0.0
    %380 = vmatpush1.msra.mxu0 0.0
    %381 = vmatprep.subr.mxu0 0.0
    %382 = vmatpush1.msra.mxu0 0.0
    %383 = vmatprep.subr.mxu0 0.0
    %384 = vmatpush1.msra.mxu0 0.0
    %385 = vmatprep.subr.mxu0 0.0
    %386 = vmatpush1.msra.mxu0 0.0
    %387 = vmatprep.subr.mxu0 0.0
    %388 = vmatpush1.msra.mxu0 0.0
    %389 = vmatprep.subr.mxu0 0.0
    %390 = vmatpush1.msra.mxu0 0.0
    %391 = vmatprep.subr.mxu0 0.0
    %392 = vmatpush1.msra.mxu0 0.0
    %393 = vmatprep.mubr.f32.mxu0 0.0
    %394 = vmatmul.mubr.f32.gmra.mrb[0].mxu0 %v327
    %v395 = vpop.f32.mrb[0].mxu0
    %v396 = vadd.f32 %v250, %v395
    %v397 = vpop.f32.mrb[0].mxu0
    %v398 = vadd.f32 %v252, %v397
    %399 = vdwg.mxu0
    %400 = vmatprep.subr.mxu0 %v104
    %401 = vmatpush1.msra.mxu0 %v103
    %402 = vmatprep.subr.mxu0 %v108
    %403 = vmatpush1.msra.mxu0 %v107
    %404 = vmatprep.subr.mxu0 %v112
    %405 = vmatpush1.msra.mxu0 %v111
    %406 = vmatprep.subr.mxu0 %v116
    %407 = vmatpush1.msra.mxu0 %v115
    %408 = vmatprep.subr.mxu0 0.0
    %409 = vmatpush1.msra.mxu0 0.0
    %410 = vmatprep.subr.mxu0 0.0
    %411 = vmatpush1.msra.mxu0 0.0
    %412 = vmatprep.subr.mxu0 0.0
    %413 = vmatpush1.msra.mxu0 0.0
    %414 = vmatprep.subr.mxu0 0.0
    %415 = vmatpush1.msra.mxu0 0.0
    %416 = vmatprep.subr.mxu0 0.0
    %417 = vmatpush1.msra.mxu0 0.0
    %418 = vmatprep.subr.mxu0 0.0
    %419 = vmatpush1.msra.mxu0 0.0
    %420 = vmatprep.subr.mxu0 0.0
    %421 = vmatpush1.msra.mxu0 0.0
    %422 = vmatprep.subr.mxu0 0.0
    %423 = vmatpush1.msra.mxu0 0.0
    %424 = vmatprep.subr.mxu0 0.0
    %425 = vmatpush1.msra.mxu0 0.0
    %426 = vmatprep.subr.mxu0 0.0
    %427 = vmatpush1.msra.mxu0 0.0
    %428 = vmatprep.subr.mxu0 0.0
    %429 = vmatpush1.msra.mxu0 0.0
    %430 = vmatprep.subr.mxu0 0.0
    %431 = vmatpush1.msra.mxu0 0.0
    %432 = vmatprep.subr.mxu0 0.0
    %433 = vmatpush1.msra.mxu0 0.0
    %434 = vmatprep.subr.mxu0 0.0
    %435 = vmatpush1.msra.mxu0 0.0
    %436 = vmatprep.subr.mxu0 0.0
    %437 = vmatpush1.msra.mxu0 0.0
    %438 = vmatprep.subr.mxu0 0.0
    %439 = vmatpush1.msra.mxu0 0.0
    %440 = vmatprep.subr.mxu0 0.0
    %441 = vmatpush1.msra.mxu0 0.0
    %442 = vmatprep.subr.mxu0 0.0
    %443 = vmatpush1.msra.mxu0 0.0
    %444 = vmatprep.subr.mxu0 0.0
    %445 = vmatpush1.msra.mxu0 0.0
    %446 = vmatprep.subr.mxu0 0.0
    %447 = vmatpush1.msra.mxu0 0.0
    %448 = vmatprep.subr.mxu0 0.0
    %449 = vmatpush1.msra.mxu0 0.0
    %450 = vmatprep.subr.mxu0 0.0
    %451 = vmatpush1.msra.mxu0 0.0
    %452 = vmatprep.subr.mxu0 0.0
    %453 = vmatpush1.msra.mxu0 0.0
    %454 = vmatprep.subr.mxu0 0.0
    %455 = vmatpush1.msra.mxu0 0.0
    %456 = vmatprep.subr.mxu0 0.0
    %457 = vmatpush1.msra.mxu0 0.0
    %458 = vmatprep.subr.mxu0 0.0
    %459 = vmatpush1.msra.mxu0 0.0
    %460 = vmatprep.subr.mxu0 0.0
    %461 = vmatpush1.msra.mxu0 0.0
    %462 = vmatprep.subr.mxu0 0.0
    %463 = vmatpush1.msra.mxu0 0.0
    %464 = vmatprep.mubr.f32.mxu0 0.0
    %465 = vmatmul.mubr.f32.gmra.mrb[0].mxu0 %v327
    %v466 = vpop.f32.mrb[0].mxu0
    %v467 = vadd.f32 %v321, %v466
    %v468 = vpop.f32.mrb[0].mxu0
    %v469 = vadd.f32 %v323, %v468
    %470 = vdwg.mxu0
    %v471 = vld [vmem:[#allocation11] sm:$0xff]
    %v472 = vld [vmem:[#allocation11 + $0x8] sm:$0xff]
    %v473 = vld [vmem:[#allocation11 + $0x10] sm:$0xff]
    %v474 = vld [vmem:[#allocation11 + $0x18] sm:$0xff]
    %v475 = vadd.f32 %v396, %v471
    %v476 = vadd.f32 %v398, %v472
    %v477 = vadd.f32 %v467, %v473
    %v478 = vadd.f32 %v469, %v474
    %v479 = vtanh.pop %v475
    %v480 = vxor.u32 %v476, 2147483648
    %v481 = vmul.f32 %v480, 1.442695
    %v482 = vpow.pop %v481
    %v483 = vadd.f32 %v482, 1.0
    %v484 = vrcp.pop %v483
    %v485 = vmul.f32 1.0, %v484
    %v486 = vxor.u32 %v477, 2147483648
    %v487 = vmul.f32 %v486, 1.442695
    %v488 = vpow.pop %v487
    %v489 = vadd.f32 %v488, 1.0
    %v490 = vrcp.pop %v489
    %v491 = vmul.f32 1.0, %v490
    %v492 = vtanh.pop %v478
    %v493 = vld [vmem:[#allocation7] sm:$0xff]
    %v494 = vmul.f32 %v493, %v491
    %v495 = vmul.f32 %v479, %v485
    %v496 = vadd.f32 %v494, %v495
    %v497 = vtanh.pop %v496
    %v498 = vmul.f32 %v497, %v492
    %499 = vst [vmem:[#allocation13] sm:$0xff] %v496
    %500 = vst [vmem:[#allocation14] sm:$0xff] %v498
    // Predicated region
    $region50: #{tpu_custom_call.1} parent=1 // pred_check
      _
    $region51: #{tpu_custom_call.1} parent=1 // pred_check_branch
      %502 = sbr.rel (0) target = $region53
    $region52: #{tpu_custom_call.1} parent=1 // pred_region
      %s504 = ssub.s32 128, 128
      %505 = vsyncadd [#allocation4], %s504
      %s507 = sshll.u32 [#allocation13], 4
      %s508 = int_to_ptr.vmem [resolvable:$true] %s507
      %510 = dma.vmem_to_hbm [thread:$0]  %s508, 128, %s6, [#allocation4]
    $region53: #{tpu_custom_call.1} parent=1 // pred_fallthru
      _
    // Predicated region
    $region54: #{tpu_custom_call.1} parent=1 // pred_check
      _
    $region55: #{tpu_custom_call.1} parent=1 // pred_check_branch
      %512 = sbr.rel (0) target = $region57
    $region56: #{tpu_custom_call.1} parent=1 // pred_region
      %s514 = ssub.s32 128, 128
      %515 = vsyncadd [#allocation15], %s514
      %s517 = sshll.u32 [#allocation14], 4
      %s518 = int_to_ptr.vmem [resolvable:$true] %s517
      %520 = dma.vmem_to_hbm [thread:$0]  %s518, 128, %s7, [#allocation15]
    $region57: #{tpu_custom_call.1} parent=1 // pred_fallthru
      _
    // Predicated region
    $region58: #{tpu_custom_call.1} parent=1 // pred_check
      _
    $region59: #{tpu_custom_call.1} parent=1 // pred_check_branch
      %522 = sbr.rel (0) target = $region61
    $region60: #{tpu_custom_call.1} parent=1 // pred_region
      %523 = dma.done [#allocation4], 128
    $region61: #{tpu_custom_call.1} parent=1 // pred_fallthru
      _
    // Predicated region
    $region62: #{tpu_custom_call.1} parent=1 // pred_check
      _
    $region63: #{tpu_custom_call.1} parent=1 // pred_check_branch
      %525 = sbr.rel (0) target = $region65
    $region64: #{tpu_custom_call.1} parent=1 // pred_region
      %526 = dma.done [#allocation15], 128
    $region65: #{tpu_custom_call.1} parent=1 // pred_fallthru
      _
    %527 = vsyncpa [#allocation3], 1
    %528 = vsyncpa [#allocation6], 1
    %529 = vsyncpa [#allocation9], 1
    %530 = vsyncpa [#allocation12], 1
    %531 = vsyncpa [#allocation4], 1
    %532 = vsyncpa [#allocation15], 1

</llo_original>
